<compile_context>
chip_gen: v7x
topology: tpu7x:2x2x1
jax: 0.10.0
libtpu: 0.0.40
codegen_flags: <defaults>
</compile_context>

<pallas_src>
import functools

import jax
import jax.numpy as jnp
from jax.experimental import pallas as pl
from jax.experimental.pallas import tpu as pltpu

MARGIN = 1.0     # args.triplet_margin
NORM_P = 2       # args.triplet_norm (general p supported, not hard-coded to 2)
EPS = 1e-6       # torch.pairwise_distance default eps


def _pairwise_distance(x, y):
    """torch.pairwise_distance semantics: ||x - y + eps||_p, keepdims -> (B, 1)."""
    diff = x - y + EPS
    if NORM_P == 2:
        return jnp.sqrt(jnp.sum(diff * diff, axis=1, keepdims=True))
    if NORM_P == 1:
        return jnp.sum(jnp.abs(diff), axis=1, keepdims=True)
    return jnp.power(
        jnp.sum(jnp.power(jnp.abs(diff), float(NORM_P)), axis=1, keepdims=True),
        1.0 / NORM_P)


def triplet_kernel(tok_emb_ref, mask_ref, wt_ref, bt_ref,
                   pos_ref, neg_ref, wi_ref, bi_ref,
                   anchor_ref, pos_emb_ref, neg_emb_ref, loss_ref,
                   acc_ref, *, hw_total, b_tile):
    r = pl.program_id(1)
    nr = pl.num_programs(1)

    # ---- start of this batch tile's HW sweep: zero the pooled-sum scratch ----
    @pl.when(r == 0)
    def _():
        acc_ref[...] = jnp.zeros_like(acc_ref)

    # ---- streaming global-average-pool partial sums (VPU adds only) ----
    # bf16 on the wire; upcast to f32 before any arithmetic (v5e-safe).
    acc_ref[0:b_tile] += pos_ref[...].astype(jnp.float32)          # (b_tile, C, hw_t)
    acc_ref[b_tile:2 * b_tile] += neg_ref[...].astype(jnp.float32)

    # ---- finalize at the last HW step: one lane-reduce, matmuls, loss ----
    @pl.when(r == nr - 1)
    def _():
        # image encoder: mean pool (single XLU lane-reduce) + fused projection
        pooled_img = jnp.sum(acc_ref[...], axis=2) * (1.0 / hw_total)  # (2*b_tile, C)
        pn = jnp.dot(pooled_img, wi_ref[...],
                     preferred_element_type=jnp.float32) + bi_ref[...]
        p = pn[:b_tile]            # positive embeddings (b_tile, D)
        n = pn[b_tile:]            # negative embeddings (b_tile, D)

        # text encoder: masked mean pool + linear projection
        tok = tok_emb_ref[...].astype(jnp.float32)                 # (b_tile, S, H)
        m = mask_ref[...][:, :, None]                              # (b_tile, S, 1)
        denom = jnp.maximum(jnp.sum(m, axis=1), 1e-9)              # (b_tile, 1)
        pooled_txt = jnp.sum(tok * m, axis=1) / denom              # (b_tile, H)
        a = jnp.dot(pooled_txt, wt_ref[...],
                    preferred_element_type=jnp.float32) + bt_ref[...]

        # TripletMarginLoss(margin, p): per-batch-tile partial SUM of hinges.
        # (Scalar mean is finished in the wrapper -> megacore-safe on v7x.)
        d_ap = _pairwise_distance(a, p)                            # (b_tile, 1)
        d_an = _pairwise_distance(a, n)
        per_example = jnp.maximum(d_ap - d_an + MARGIN, 0.0)
        loss_ref[0, 0] = jnp.sum(per_example)

        anchor_ref[...] = a.astype(anchor_ref.dtype)
        pos_emb_ref[...] = p.astype(pos_emb_ref.dtype)
        neg_emb_ref[...] = n.astype(neg_emb_ref.dtype)


def text_to_image_triplet_forward(anchor_input_ids, anchor_attention_mask,
                                  positive_image, negative_image, params,
                                  *, b_tile=None, hw_tile=512):
    """positive_image / negative_image: NCHW float32."""
    B, S = anchor_input_ids.shape
    N, C, H, W = positive_image.shape
    assert N == B, "anchor batch must equal image batch"
    assert negative_image.shape == positive_image.shape
    HW = H * W
    Hd = params["embed_table"].shape[1]
    D = params["w_text"].shape[1]

    # --- tiling choices (bounded VMEM: fits v7x's 64 MiB as well as v5e/v6e) ---
    if b_tile is None:
        b_tile = 8 if B % 8 == 0 else B
    if B % b_tile != 0:
        b_tile = B
    if HW % hw_tile != 0 or not (hw_tile % 128 == 0 or hw_tile == HW):
        hw_tile = HW
    nb = B // b_tile
    nr = HW // hw_tile

    # Glue: embedding gather is data-dependent -> done outside the kernel.
    # TODO(synk): fuse the gather in-kernel (ids via scalar prefetch in SMEM +
    # per-row DMA from an HBM-resident embed_table) to avoid the (B,S,H) HBM roundtrip.
    tok_emb = params["embed_table"][anchor_input_ids].astype(jnp.bfloat16)  # (B,S,Hd)
    mask_f = anchor_attention_mask.astype(jnp.float32)                      # (B,S)
    pos_flat = positive_image.reshape(N, C, HW).astype(jnp.bfloat16)        # bf16 on the wire
    neg_flat = negative_image.reshape(N, C, HW).astype(jnp.bfloat16)

    kernel = functools.partial(triplet_kernel, hw_total=float(HW), b_tile=b_tile)

    out_shapes = (
        jax.ShapeDtypeStruct((B, D), jnp.float32),    # anchor embedding
        jax.ShapeDtypeStruct((B, D), jnp.float32),    # positive embedding
        jax.ShapeDtypeStruct((B, D), jnp.float32),    # negative embedding
        jax.ShapeDtypeStruct((nb, 1), jnp.float32),   # per-batch-tile loss partial sums
    )

    in_specs = [
        # text inputs: resident across the HW reduction axis (constant r index)
        pl.BlockSpec((b_tile, S, Hd), lambda b, r: (b, 0, 0)),
        pl.BlockSpec((b_tile, S), lambda b, r: (b, 0)),
        # weights: constant block index -> DMA'd once, stay resident in VMEM
        pl.BlockSpec((Hd, D), lambda b, r: (0, 0)),
        pl.BlockSpec((1, D), lambda b, r: (0, 0)),
        # images: streamed over the HW axis
        pl.BlockSpec((b_tile, C, hw_tile), lambda b, r: (b, 0, r)),
        pl.BlockSpec((b_tile, C, hw_tile), lambda b, r: (b, 0, r)),
        pl.BlockSpec((C, D), lambda b, r: (0, 0)),
        pl.BlockSpec((1, D), lambda b, r: (0, 0)),
    ]
    out_specs = (
        pl.BlockSpec((b_tile, D), lambda b, r: (b, 0)),
        pl.BlockSpec((b_tile, D), lambda b, r: (b, 0)),
        pl.BlockSpec((b_tile, D), lambda b, r: (b, 0)),
        pl.BlockSpec((1, 1), lambda b, r: (b, 0),
                     memory_space=pltpu.MemorySpace.SMEM),
    )

    anchor_emb, pos_emb, neg_emb, loss_parts = pl.pallas_call(
        kernel,
        out_shape=out_shapes,
        grid=(nb, nr),
        in_specs=in_specs,
        out_specs=out_specs,
        scratch_shapes=[pltpu.VMEM((2 * b_tile, C, hw_tile), jnp.float32)],
        compiler_params=pltpu.CompilerParams(
            dimension_semantics=("parallel", "arbitrary"),
            vmem_limit_bytes=32 * 1024 * 1024),
    )(tok_emb, mask_f, params["w_text"], params["b_text"],
      pos_flat, neg_flat, params["w_img"], params["b_img"])

    loss = jnp.sum(loss_parts) / B   # finish the mean reduction outside the kernel

    return {
        "loss": loss,
        "anchor_embedding": anchor_emb,
        "positive_embedding": pos_emb,
        "negative_embedding": neg_emb,
    }


def make_params(vocab_size, hidden, channels, embed_dim):
    k = jax.random.PRNGKey(42)
    k1, k2, k3, k4, k5 = jax.random.split(k, 5)
    return {
        "embed_table": jax.random.normal(k1, (vocab_size, hidden), jnp.float32) * 0.02,
        "w_text": jax.random.normal(k2, (hidden, embed_dim), jnp.float32) * 0.1,
        "b_text": jax.random.normal(k3, (1, embed_dim), jnp.float32) * 0.01,
        "w_img": jax.random.normal(k4, (channels, embed_dim), jnp.float32) * 0.1,
        "b_img": jax.random.normal(k5, (1, embed_dim), jnp.float32) * 0.01,
    }


if __name__ == "__main__":
    B = 2          # batch
    S = 8          # sequence length
    VOCAB = 32
    HIDDEN = 32
    C, Him, Wim = 4, 16, 16
    D = 128        # shared embedding dim (multiple of 128 -> lane-dense stores)

    params = make_params(VOCAB, HIDDEN, C, D)

    key = jax.random.PRNGKey(0)
    k_ids, k_pos, k_neg = jax.random.split(key, 3)
    anchor_input_ids = jax.random.randint(k_ids, (B, S), 0, VOCAB, dtype=jnp.int32)
    anchor_attention_mask = jnp.concatenate(
        [jnp.ones((B, S // 2), dtype=jnp.int32),
         jnp.array([[1] * (S // 2), [0] * (S // 2)], dtype=jnp.int32)], axis=1)
    positive_image = jax.random.normal(k_pos, (B, C, Him, Wim), jnp.float32)
    negative_image = jax.random.normal(k_neg, (B, C, Him, Wim), jnp.float32)

    # hw_tile=128 -> 2 HW reduction steps, exercising the streaming/pl.when path.
    out = text_to_image_triplet_forward(anchor_input_ids, anchor_attention_mask,
                                        positive_image, negative_image, params,
                                        hw_tile=128)
    jax.block_until_ready(out)

    assert out["anchor_embedding"].shape == (B, D)
    assert out["positive_embedding"].shape == (B, D)
    assert out["negative_embedding"].shape == (B, D)
    assert out["loss"].shape == ()
    assert bool(jnp.isfinite(out["loss"]))
    print("KERNEL_OK")
</pallas_src>

<mosaic_0001>
module attributes {stable_mosaic.version = 11 : i64} {
  func.func @triplet_kernel(%arg0: i32, %arg1: i32, %arg2: memref<2x8x32xbf16, #tpu.memory_space<vmem>>, %arg3: memref<2x8xf32, #tpu.memory_space<vmem>>, %arg4: memref<32x128xf32, #tpu.memory_space<vmem>>, %arg5: memref<1x128xf32, #tpu.memory_space<vmem>>, %arg6: memref<2x4x128xbf16, #tpu.memory_space<vmem>>, %arg7: memref<2x4x128xbf16, #tpu.memory_space<vmem>>, %arg8: memref<4x128xf32, #tpu.memory_space<vmem>>, %arg9: memref<1x128xf32, #tpu.memory_space<vmem>>, %arg10: memref<2x128xf32, #tpu.memory_space<vmem>>, %arg11: memref<2x128xf32, #tpu.memory_space<vmem>>, %arg12: memref<2x128xf32, #tpu.memory_space<vmem>>, %arg13: memref<1x1xf32, #tpu.memory_space<smem>>, %arg14: memref<4x4x128xf32, #tpu.memory_space<vmem>>) attributes {dimension_semantics = [#tpu.dimension_semantics<parallel>, #tpu.dimension_semantics<arbitrary>], iteration_bounds = array<i64: 1, 2>, scalar_prefetch = 0 : i64, scratch_operands = 1 : i64, tpu.core_type = #tpu.core_type<tc>, window_params = [{transform_indices = @transform_0, window_bounds = array<i64: 2, 8, 32>}, {transform_indices = @transform_1, window_bounds = array<i64: 2, 8>}, {pipeline_mode = #tpu.pipeline_mode<synchronous>, transform_indices = @transform_2, window_bounds = array<i64: 32, 128>}, {pipeline_mode = #tpu.pipeline_mode<synchronous>, transform_indices = @transform_3, window_bounds = array<i64: 1, 128>}, {transform_indices = @transform_4, window_bounds = array<i64: 2, 4, 128>}, {transform_indices = @transform_5, window_bounds = array<i64: 2, 4, 128>}, {pipeline_mode = #tpu.pipeline_mode<synchronous>, transform_indices = @transform_6, window_bounds = array<i64: 4, 128>}, {pipeline_mode = #tpu.pipeline_mode<synchronous>, transform_indices = @transform_7, window_bounds = array<i64: 1, 128>}, {transform_indices = @transform_8, window_bounds = array<i64: 2, 128>}, {transform_indices = @transform_9, window_bounds = array<i64: 2, 128>}, {transform_indices = @transform_10, window_bounds = array<i64: 2, 128>}, {transform_indices = @transform_11, window_bounds = array<i64: 1, 1>}]} {
    %c0_i32 = arith.constant 0 : i32
    %0 = arith.cmpi eq, %arg1, %c0_i32 : i32
    %1 = arith.extui %0 : i1 to i32
    %c0_i32_0 = arith.constant 0 : i32
    %2 = arith.cmpi ne, %1, %c0_i32_0 : i32
    scf.if %2 {
      %cst = arith.constant 0.000000e+00 : f32
      %16 = vector.broadcast %cst : f32 to vector<4x4x128xf32>
      %c0_18 = arith.constant 0 : index
      %c0_19 = arith.constant 0 : index
      %c0_20 = arith.constant 0 : index
      %17 = vector.load %arg14[%c0_18, %c0_19, %c0_20] : memref<4x4x128xf32, #tpu.memory_space<vmem>>, vector<4x4x128xf32>
      tpu.vector_store %arg14[%c0_18, %c0_19, %c0_20], %16 {strides = array<i32>} : memref<4x4x128xf32, #tpu.memory_space<vmem>>, vector<4x4x128xf32>,
    } else {
    }
    %c0 = arith.constant 0 : index
    %c0_1 = arith.constant 0 : index
    %c0_2 = arith.constant 0 : index
    %3 = vector.load %arg14[%c0, %c0_1, %c0_2] : memref<4x4x128xf32, #tpu.memory_space<vmem>>, vector<2x4x128xf32>
    %c0_3 = arith.constant 0 : index
    %c0_4 = arith.constant 0 : index
    %c0_5 = arith.constant 0 : index
    %4 = vector.load %arg6[%c0_3, %c0_4, %c0_5] : memref<2x4x128xbf16, #tpu.memory_space<vmem>>, vector<2x4x128xbf16>
    %5 = arith.extf %4 : vector<2x4x128xbf16> to vector<2x4x128xf32>
    %6 = arith.addf %3, %5 : vector<2x4x128xf32>
    %c0_6 = arith.constant 0 : index
    %c0_7 = arith.constant 0 : index
    %c0_8 = arith.constant 0 : index
    %7 = vector.load %arg14[%c0_6, %c0_7, %c0_8] : memref<4x4x128xf32, #tpu.memory_space<vmem>>, vector<2x4x128xf32>
    tpu.vector_store %arg14[%c0_6, %c0_7, %c0_8], %6 {strides = array<i32>} : memref<4x4x128xf32, #tpu.memory_space<vmem>>, vector<2x4x128xf32>,
    %c2 = arith.constant 2 : index
    %c0_9 = arith.constant 0 : index
    %c0_10 = arith.constant 0 : index
    %8 = vector.load %arg14[%c2, %c0_9, %c0_10] : memref<4x4x128xf32, #tpu.memory_space<vmem>>, vector<2x4x128xf32>
    %c0_11 = arith.constant 0 : index
    %c0_12 = arith.constant 0 : index
    %c0_13 = arith.constant 0 : index
    %9 = vector.load %arg7[%c0_11, %c0_12, %c0_13] : memref<2x4x128xbf16, #tpu.memory_space<vmem>>, vector<2x4x128xbf16>
    %10 = arith.extf %9 : vector<2x4x128xbf16> to vector<2x4x128xf32>
    %11 = arith.addf %8, %10 : vector<2x4x128xf32>
    %c2_14 = arith.constant 2 : index
    %c0_15 = arith.constant 0 : index
    %c0_16 = arith.constant 0 : index
    %12 = vector.load %arg14[%c2_14, %c0_15, %c0_16] : memref<4x4x128xf32, #tpu.memory_space<vmem>>, vector<2x4x128xf32>
    tpu.vector_store %arg14[%c2_14, %c0_15, %c0_16], %11 {strides = array<i32>} : memref<4x4x128xf32, #tpu.memory_space<vmem>>, vector<2x4x128xf32>,
    %c1_i32 = arith.constant 1 : i32
    %13 = arith.cmpi eq, %arg1, %c1_i32 : i32
    %14 = arith.extui %13 : i1 to i32
    %c0_i32_17 = arith.constant 0 : i32
    %15 = arith.cmpi ne, %14, %c0_i32_17 : i32
    scf.if %15 {
      %c0_18 = arith.constant 0 : index
      %c0_19 = arith.constant 0 : index
      %c0_20 = arith.constant 0 : index
      %16 = vector.load %arg14[%c0_18, %c0_19, %c0_20] : memref<4x4x128xf32, #tpu.memory_space<vmem>>, vector<4x4x128xf32>
      %cst = arith.constant dense<0.000000e+00> : vector<4x4xf32>
      %17 = vector.multi_reduction <add>, %16, %cst [2] : vector<4x4x128xf32> to vector<4x4xf32>
      %cst_21 = arith.constant 3.906250e-03 : f32
      %18 = vector.broadcast %cst_21 : f32 to vector<4x4xf32>
      %19 = arith.mulf %17, %18 : vector<4x4xf32>
      %c0_22 = arith.constant 0 : index
      %c0_23 = arith.constant 0 : index
      %20 = vector.load %arg8[%c0_22, %c0_23] : memref<4x128xf32, #tpu.memory_space<vmem>>, vector<4x128xf32>
      %cst_24 = arith.constant dense<0.000000e+00> : vector<4x128xf32>
      %21 = tpu.matmul %19, %20, %cst_24 {dimension_numbers = #tpu.dot_dimension_numbers<[1], [0], [0], [1], [0, 0, 1, 1], [], []>} : vector<4x4xf32>, vector<4x128xf32>, vector<4x128xf32> -> vector<4x128xf32>
      %c0_25 = arith.constant 0 : index
      %c0_26 = arith.constant 0 : index
      %22 = vector.load %arg9[%c0_25, %c0_26] : memref<1x128xf32, #tpu.memory_space<vmem>>, vector<1x128xf32>
      %23 = vector.broadcast %22 : vector<1x128xf32> to vector<4x128xf32>
      %24 = arith.addf %21, %23 : vector<4x128xf32>
      %25 = vector.extract_strided_slice %24 {offsets = [0, 0], sizes = [2, 128], strides = [1, 1]} : vector<4x128xf32> to vector<2x128xf32>
      %26 = vector.extract_strided_slice %24 {offsets = [2, 0], sizes = [2, 128], strides = [1, 1]} : vector<4x128xf32> to vector<2x128xf32>
      %c0_27 = arith.constant 0 : index
      %c0_28 = arith.constant 0 : index
      %c0_29 = arith.constant 0 : index
      %27 = vector.load %arg2[%c0_27, %c0_28, %c0_29] : memref<2x8x32xbf16, #tpu.memory_space<vmem>>, vector<2x8x32xbf16>
      %28 = arith.extf %27 : vector<2x8x32xbf16> to vector<2x8x32xf32>
      %c0_30 = arith.constant 0 : index
      %c0_31 = arith.constant 0 : index
      %29 = vector.load %arg3[%c0_30, %c0_31] : memref<2x8xf32, #tpu.memory_space<vmem>>, vector<2x8xf32>
      %30 = vector.shape_cast %29 : vector<2x8xf32> to vector<2x8x1xf32>
      %cst_32 = arith.constant dense<0.000000e+00> : vector<2x1xf32>
      %31 = vector.multi_reduction <add>, %30, %cst_32 [1] : vector<2x8x1xf32> to vector<2x1xf32>
      %cst_33 = arith.constant 9.99999971E-10 : f32
      %32 = vector.broadcast %cst_33 : f32 to vector<2x1xf32>
      %33 = arith.maximumf %31, %32 : vector<2x1xf32>
      %34 = vector.broadcast %30 : vector<2x8x1xf32> to vector<2x8x32xf32>
      %35 = arith.mulf %28, %34 : vector<2x8x32xf32>
      %cst_34 = arith.constant dense<0.000000e+00> : vector<2x32xf32>
      %36 = vector.multi_reduction <add>, %35, %cst_34 [1] : vector<2x8x32xf32> to vector<2x32xf32>
      %37 = vector.broadcast %33 : vector<2x1xf32> to vector<2x32xf32>
      %38 = arith.divf %36, %37 : vector<2x32xf32>
      %c0_35 = arith.constant 0 : index
      %c0_36 = arith.constant 0 : index
      %39 = vector.load %arg4[%c0_35, %c0_36] : memref<32x128xf32, #tpu.memory_space<vmem>>, vector<32x128xf32>
      %cst_37 = arith.constant dense<0.000000e+00> : vector<2x128xf32>
      %40 = tpu.matmul %38, %39, %cst_37 {dimension_numbers = #tpu.dot_dimension_numbers<[1], [0], [0], [1], [0, 0, 1, 1], [], []>} : vector<2x32xf32>, vector<32x128xf32>, vector<2x128xf32> -> vector<2x128xf32>
      %c0_38 = arith.constant 0 : index
      %c0_39 = arith.constant 0 : index
      %41 = vector.load %arg5[%c0_38, %c0_39] : memref<1x128xf32, #tpu.memory_space<vmem>>, vector<1x128xf32>
      %42 = vector.broadcast %41 : vector<1x128xf32> to vector<2x128xf32>
      %43 = arith.addf %40, %42 : vector<2x128xf32>
      %44 = arith.subf %43, %25 : vector<2x128xf32>
      %cst_40 = arith.constant 9.99999997E-7 : f32
      %45 = vector.broadcast %cst_40 : f32 to vector<2x128xf32>
      %46 = arith.addf %44, %45 : vector<2x128xf32>
      %47 = arith.mulf %46, %46 : vector<2x128xf32>
      %cst_41 = arith.constant dense<0.000000e+00> : vector<2xf32>
      %48 = vector.multi_reduction <add>, %47, %cst_41 [1] : vector<2x128xf32> to vector<2xf32>
      %49 = vector.shape_cast %48 : vector<2xf32> to vector<2x1xf32>
      %50 = math.sqrt %49 : vector<2x1xf32>
      %51 = arith.subf %43, %26 : vector<2x128xf32>
      %cst_42 = arith.constant 9.99999997E-7 : f32
      %52 = vector.broadcast %cst_42 : f32 to vector<2x128xf32>
      %53 = arith.addf %51, %52 : vector<2x128xf32>
      %54 = arith.mulf %53, %53 : vector<2x128xf32>
      %cst_43 = arith.constant dense<0.000000e+00> : vector<2xf32>
      %55 = vector.multi_reduction <add>, %54, %cst_43 [1] : vector<2x128xf32> to vector<2xf32>
      %56 = vector.shape_cast %55 : vector<2xf32> to vector<2x1xf32>
      %57 = math.sqrt %56 : vector<2x1xf32>
      %58 = arith.subf %50, %57 : vector<2x1xf32>
      %cst_44 = arith.constant 1.000000e+00 : f32
      %59 = vector.broadcast %cst_44 : f32 to vector<2x1xf32>
      %60 = arith.addf %58, %59 : vector<2x1xf32>
      %cst_45 = arith.constant 0.000000e+00 : f32
      %61 = vector.broadcast %cst_45 : f32 to vector<2x1xf32>
      %62 = arith.maximumf %60, %61 : vector<2x1xf32>
      %63 = vector.shape_cast %62 : vector<2x1xf32> to vector<1x2x1xf32>
      %cst_46 = arith.constant dense<0.000000e+00> : vector<1xf32>
      %64 = vector.multi_reduction <add>, %63, %cst_46 [1, 2] : vector<1x2x1xf32> to vector<1xf32>
      %65 = vector.shape_cast %64 : vector<1xf32> to vector<1x1x1xf32>
      %66 = vector.extract %65[0, 0, 0] : f32 from vector<1x1x1xf32>
      %c0_47 = arith.constant 0 : index
      %c0_48 = arith.constant 0 : index
      %67 = memref.load %arg13[%c0_47, %c0_48] : memref<1x1xf32, #tpu.memory_space<smem>>
      memref.store %66, %arg13[%c0_47, %c0_48] : memref<1x1xf32, #tpu.memory_space<smem>>
      %c0_49 = arith.constant 0 : index
      %c0_50 = arith.constant 0 : index
      %68 = vector.load %arg10[%c0_49, %c0_50] : memref<2x128xf32, #tpu.memory_space<vmem>>, vector<2x128xf32>
      tpu.vector_store %arg10[%c0_49, %c0_50], %43 {strides = array<i32>} : memref<2x128xf32, #tpu.memory_space<vmem>>, vector<2x128xf32>,
      %c0_51 = arith.constant 0 : index
      %c0_52 = arith.constant 0 : index
      %69 = vector.load %arg11[%c0_51, %c0_52] : memref<2x128xf32, #tpu.memory_space<vmem>>, vector<2x128xf32>
      tpu.vector_store %arg11[%c0_51, %c0_52], %25 {strides = array<i32>} : memref<2x128xf32, #tpu.memory_space<vmem>>, vector<2x128xf32>,
      %c0_53 = arith.constant 0 : index
      %c0_54 = arith.constant 0 : index
      %70 = vector.load %arg12[%c0_53, %c0_54] : memref<2x128xf32, #tpu.memory_space<vmem>>, vector<2x128xf32>
      tpu.vector_store %arg12[%c0_53, %c0_54], %26 {strides = array<i32>} : memref<2x128xf32, #tpu.memory_space<vmem>>, vector<2x128xf32>,
    } else {
    }
    return
  }
  func.func @transform_0(%arg0: i32, %arg1: i32) -> (i32, i32, i32) {
    %c0_i32 = arith.constant 0 : i32
    %c0_i32_0 = arith.constant 0 : i32
    %c0_i32_1 = arith.constant 0 : i32
    return %arg0, %c0_i32, %c0_i32_0 : i32, i32, i32
  }
  func.func @transform_1(%arg0: i32, %arg1: i32) -> (i32, i32) {
    %c0_i32 = arith.constant 0 : i32
    %c0_i32_0 = arith.constant 0 : i32
    return %arg0, %c0_i32 : i32, i32
  }
  func.func @transform_2(%arg0: i32, %arg1: i32) -> (i32, i32) {
    %c0_i32 = arith.constant 0 : i32
    %c0_i32_0 = arith.constant 0 : i32
    %c0_i32_1 = arith.constant 0 : i32
    return %c0_i32, %c0_i32_0 : i32, i32
  }
  func.func @transform_3(%arg0: i32, %arg1: i32) -> (i32, i32) {
    %c0_i32 = arith.constant 0 : i32
    %c0_i32_0 = arith.constant 0 : i32
    %c0_i32_1 = arith.constant 0 : i32
    return %c0_i32, %c0_i32_0 : i32, i32
  }
  func.func @transform_4(%arg0: i32, %arg1: i32) -> (i32, i32, i32) {
    %c0_i32 = arith.constant 0 : i32
    %c0_i32_0 = arith.constant 0 : i32
    return %arg0, %c0_i32, %arg1 : i32, i32, i32
  }
  func.func @transform_5(%arg0: i32, %arg1: i32) -> (i32, i32, i32) {
    %c0_i32 = arith.constant 0 : i32
    %c0_i32_0 = arith.constant 0 : i32
    return %arg0, %c0_i32, %arg1 : i32, i32, i32
  }
  func.func @transform_6(%arg0: i32, %arg1: i32) -> (i32, i32) {
    %c0_i32 = arith.constant 0 : i32
    %c0_i32_0 = arith.constant 0 : i32
    %c0_i32_1 = arith.constant 0 : i32
    return %c0_i32, %c0_i32_0 : i32, i32
  }
  func.func @transform_7(%arg0: i32, %arg1: i32) -> (i32, i32) {
    %c0_i32 = arith.constant 0 : i32
    %c0_i32_0 = arith.constant 0 : i32
    %c0_i32_1 = arith.constant 0 : i32
    return %c0_i32, %c0_i32_0 : i32, i32
  }
  func.func @transform_8(%arg0: i32, %arg1: i32) -> (i32, i32) {
    %c0_i32 = arith.constant 0 : i32
    %c0_i32_0 = arith.constant 0 : i32
    return %arg0, %c0_i32 : i32, i32
  }
  func.func @transform_9(%arg0: i32, %arg1: i32) -> (i32, i32) {
    %c0_i32 = arith.constant 0 : i32
    %c0_i32_0 = arith.constant 0 : i32
    return %arg0, %c0_i32 : i32, i32
  }
  func.func @transform_10(%arg0: i32, %arg1: i32) -> (i32, i32) {
    %c0_i32 = arith.constant 0 : i32
    %c0_i32_0 = arith.constant 0 : i32
    return %arg0, %c0_i32 : i32, i32
  }
  func.func @transform_11(%arg0: i32, %arg1: i32) -> (i32, i32) {
    %c0_i32 = arith.constant 0 : i32
    %c0_i32_0 = arith.constant 0 : i32
    return %arg0, %c0_i32 : i32, i32
  }
}

</mosaic_0001>

<llo_original>
// kernel: tpu_custom_call.1
$region0: #{tpu_custom_call.1}
  #allocation0 [shape = 'u32[]', space=smem, size = 0x4, offset = 0x4, fixed_abs, tag = 'smem constant byte address 0x4 - core index']
  #allocation1 [shape = 'u32[144,128]{1,0:T(1,128)}', space=vmem, size = 0x12000, scoped, tag = 'internal scratch']
  #allocation2 [shape = 'f32[4,4,128]{2,1,0:T(4,128)}', space=vmem, size = 0x2000, scoped, tag = 'scratch operand']
  %s0 = inlined_call_operand.hbm [shape: bf16[2,8,32], index: 0, kind: input, shape index: {}]
  %s1 = inlined_call_operand.vmem [shape: f32[2,8], index: 1, kind: input, shape index: {}]
  %s2 = inlined_call_operand.hbm [shape: f32[32,128], index: 2, kind: input, shape index: {}]
  %s3 = inlined_call_operand.hbm [shape: f32[1,128], index: 3, kind: input, shape index: {}]
  %s4 = inlined_call_operand.vmem [shape: bf16[2,4,256], index: 4, kind: input, shape index: {}]
  %s5 = inlined_call_operand.vmem [shape: bf16[2,4,256], index: 5, kind: input, shape index: {}]
  %s6 = inlined_call_operand.vmem [shape: f32[4,128], index: 6, kind: input, shape index: {}]
  %s7 = inlined_call_operand.vmem [shape: f32[1,128], index: 7, kind: input, shape index: {}]
  %s8 = inlined_call_operand.hbm [shape: f32[2,128], index: 8, kind: output, shape index: {0}]
  %s9 = inlined_call_operand.hbm [shape: f32[2,128], index: 9, kind: output, shape index: {1}]
  %s10 = inlined_call_operand.hbm [shape: f32[2,128], index: 10, kind: output, shape index: {2}]
  %s11 = inlined_call_operand.hbm [shape: f32[1,1], index: 11, kind: output, shape index: {3}]
  %12 = xla_tuple %s8, %s9, %s10, %s11
  %s13 = sld [smem:[#allocation0]]
  $region177: #{tpu_custom_call.1} parent=0
    _
  %s15 = ssub.s32 1, %s13
  %s16 = scalar_select 0, %s15, %s13
  $region1: #{tpu_custom_call.1} parent=0
    #allocation3 [shape = 'u8[4096]{0}', space=vmem, size = 0x1000, scoped, tag = 'input window, operand 0, single buffered']
    #allocation4 [shape = 's32[2]{0}', space=sflag, size = 0x8, scoped, tag = 'scoped memory for tpu_custom_call.1']
    #allocation5 [shape = 's32[2]{0}', space=sflag, size = 0x8, scoped, tag = 'scoped memory for tpu_custom_call.1']
    #allocation6 [shape = 's32[2]{0}', space=sflag, size = 0x8, scoped, tag = 'scoped memory for tpu_custom_call.1']
    #allocation7 [shape = 'u8[16384]{0}', space=vmem, size = 0x4000, scoped, tag = 'input window, operand 2, single buffered']
    #allocation8 [shape = 's32[1]{0}', space=sflag, size = 0x4, scoped, tag = 'scoped memory for tpu_custom_call.1']
    #allocation9 [shape = 'u8[512]{0}', space=vmem, size = 0x400, scoped, tag = 'input window, operand 3, single buffered']
    #allocation10 [shape = 'u8[4096]{0}', space=vmem, size = 0x1000, scoped, tag = 'input window, operand 4']
    #allocation11 [shape = 'u8[4096]{0}', space=vmem, size = 0x1000, scoped, tag = 'input window, operand 5']
    #allocation12 [shape = 'u8[1024]{0}', space=vmem, size = 0x400, scoped, tag = 'output window, operand 0, single buffered']
    #allocation13 [shape = 'u8[1024]{0}', space=vmem, size = 0x400, scoped, tag = 'output window, operand 1, single buffered']
    #allocation14 [shape = 's32[1]{0}', space=sflag, size = 0x4, scoped, tag = 'scoped memory for tpu_custom_call.1']
    #allocation15 [shape = 'u8[1024]{0}', space=vmem, size = 0x400, scoped, tag = 'output window, operand 2, single buffered']
    #allocation16 [shape = 'u8[512]{0}', space=smem, size = 0x200, scoped, tag = 'output window, operand 3, single buffered']
    %17 = vsyncpa [#allocation4], 0
    %18 = vsyncpa [#allocation8], 0
    %19 = vsyncpa [#allocation5], 0
    %20 = vsyncpa [#allocation14], 0
    %21 = vsyncpa [#allocation6], 0
    loop: start=0, step=1, limit=4
    $region2: #{tpu_custom_call.1} parent=1 // loop_pre_header
      _
    $region3: #{tpu_custom_call.1} parent=1 // loop_header
      %s23 = sphi 0, %s27
      %p24 = scmp.ge.s32.totalorder %s23, 4
      %s30 = sphi 0, %s42
      %s31 = sphi 0, %s38
      %s32 = sphi 0, %s30
      %s33 = sphi 0, %s31
      %s34 = sphi 0, %s32
      %s35 = sphi 0, %s33
      %s45 = sphi 0, %s47
      %s48 = sphi 0, %s45
      %s49 = sphi 0, %s48
      %s65 = sphi 0, %s49
      %s71 = sphi 0, %s73
      %s74 = sphi 0, %s71
      %s75 = sphi 0, %s74
      %s91 = sphi 0, %s75
      %s95 = sphi 0, %s95
      %s97 = sphi 0, %s95
      %s98 = sphi 0, %s97
      %s112 = sphi 0, %s98
      %s116 = sphi 0, %s116
      %s118 = sphi 0, %s116
      %s119 = sphi 0, %s118
      %s133 = sphi 0, %s119
      %s141 = sphi 0, %s143
      %s144 = sphi 0, %s141
      %s145 = sphi 0, %s144
      %s161 = sphi 0, %s145
      %s169 = sphi 0, %s171
      %s172 = sphi 0, %s169
      %s173 = sphi 0, %s172
      %s189 = sphi 0, %s173
      %s193 = sphi 0, %s193
      %s195 = sphi 0, %s193
      %s196 = sphi 0, %s195
      %s210 = sphi 0, %s196
      %s214 = sphi 0, %s214
      %s216 = sphi 0, %s214
      %s217 = sphi 0, %s216
      %s231 = sphi 0, %s217
      %s237 = sphi 0, %s239
      %s240 = sphi 0, %s237
      %s241 = sphi 0, %s240
      %s257 = sphi 0, %s241
      %s263 = sphi 0, %s265
      %s266 = sphi 0, %s263
      %s267 = sphi 0, %s266
      %s283 = sphi 0, %s267
      %s289 = sphi 0, %s291
      %s292 = sphi 0, %s289
      %s293 = sphi 0, %s292
      %s309 = sphi 0, %s293
      %s315 = sphi 0, %s317
      %s318 = sphi 0, %s315
      %s319 = sphi 0, %s318
      %s335 = sphi 0, %s319
    $region4: #{tpu_custom_call.1} parent=1 // loop_header_branch
      %26 = sbr.rel (%p24) target = $region8
    $region5: #{tpu_custom_call.1} parent=1 // loop_body
      %s28 = ssub.s32 %s23, 1
      %s29 = ssub.s32 %s23, 2
      %s36 = sadd.s32 1, %s31
      %p37 = scmp.ge.s32.totalorder %s36, 2
      %s38 = scalar_select %p37, 0, %s36
      %s39 = sadd.s32 1, %s30
      %s40 = scalar_select %p37, %s39, %s30
      %p41 = scmp.ge.s32.totalorder %s40, 1
      %s42 = scalar_select %p41, 0, %s40
      %s43 = ssub.s32 %s30, %s42
      %p44 = scmp.eq.s32.totalorder %s43, 0
      %s46 = sadd.s32 %s45, 1
      %s47 = scalar_select %p44, %s45, %s46
      %p50 = pneg %p44
      %p51 = scmp.eq.s32.totalorder %s23, 1
      %p52 = por %p50, %p51
      %p53 = scmp.ne.s32.totalorder %s45, %s48
      %p54 = scmp.eq.s32.totalorder %s23, 0
      %p55 = por %p53, %p54
      %p56 = scmp.ne.s32.totalorder %s45, %s48
      %p57 = scmp.eq.s32.totalorder %s28, 1
      %p58 = por %p56, %p57
      %p59 = scmp.ne.s32.totalorder %s48, %s49
      %p60 = scmp.eq.s32.totalorder %s28, 0
      %p61 = por %p59, %p60
      %p62 = scmp.ne.s32.totalorder %s48, %s49
      %p63 = scmp.eq.s32.totalorder %s29, 1
      %p64 = por %p62, %p63
      %p66 = scmp.ne.s32.totalorder %s49, %s65
      %p67 = scmp.eq.s32.totalorder %s29, 0
      %p68 = por %p66, %p67
      %s69 = ssub.s32 %s30, %s42
      %p70 = scmp.eq.s32.totalorder %s69, 0
      %s72 = sadd.s32 %s71, 1
      %s73 = scalar_select %p70, %s71, %s72
      %p76 = pneg %p70
      %p77 = scmp.eq.s32.totalorder %s23, 1
      %p78 = por %p76, %p77
      %p79 = scmp.ne.s32.totalorder %s71, %s74
      %p80 = scmp.eq.s32.totalorder %s23, 0
      %p81 = por %p79, %p80
      %p82 = scmp.ne.s32.totalorder %s71, %s74
      %p83 = scmp.eq.s32.totalorder %s28, 1
      %p84 = por %p82, %p83
      %p85 = scmp.ne.s32.totalorder %s74, %s75
      %p86 = scmp.eq.s32.totalorder %s28, 0
      %p87 = por %p85, %p86
      %p88 = scmp.ne.s32.totalorder %s74, %s75
      %p89 = scmp.eq.s32.totalorder %s29, 1
      %p90 = por %p88, %p89
      %p92 = scmp.ne.s32.totalorder %s75, %s91
      %p93 = scmp.eq.s32.totalorder %s29, 0
      %p94 = por %p92, %p93
      %s96 = sadd.s32 %s95, 1
      %p99 = scmp.eq.s32.totalorder %s23, 1
      %p100 = scmp.ne.s32.totalorder %s95, %s97
      %p101 = scmp.eq.s32.totalorder %s23, 0
      %p102 = por %p100, %p101
      %p103 = scmp.ne.s32.totalorder %s95, %s97
      %p104 = scmp.eq.s32.totalorder %s28, 1
      %p105 = por %p103, %p104
      %p106 = scmp.ne.s32.totalorder %s97, %s98
      %p107 = scmp.eq.s32.totalorder %s28, 0
      %p108 = por %p106, %p107
      %p109 = scmp.ne.s32.totalorder %s97, %s98
      %p110 = scmp.eq.s32.totalorder %s29, 1
      %p111 = por %p109, %p110
      %p113 = scmp.ne.s32.totalorder %s98, %s112
      %p114 = scmp.eq.s32.totalorder %s29, 0
      %p115 = por %p113, %p114
      %s117 = sadd.s32 %s116, 1
      %p120 = scmp.eq.s32.totalorder %s23, 1
      %p121 = scmp.ne.s32.totalorder %s116, %s118
      %p122 = scmp.eq.s32.totalorder %s23, 0
      %p123 = por %p121, %p122
      %p124 = scmp.ne.s32.totalorder %s116, %s118
      %p125 = scmp.eq.s32.totalorder %s28, 1
      %p126 = por %p124, %p125
      %p127 = scmp.ne.s32.totalorder %s118, %s119
      %p128 = scmp.eq.s32.totalorder %s28, 0
      %p129 = por %p127, %p128
      %p130 = scmp.ne.s32.totalorder %s118, %s119
      %p131 = scmp.eq.s32.totalorder %s29, 1
      %p132 = por %p130, %p131
      %p134 = scmp.ne.s32.totalorder %s119, %s133
      %p135 = scmp.eq.s32.totalorder %s29, 0
      %p136 = por %p134, %p135
      %s137 = ssub.s32 %s30, %s42
      %s138 = ssub.s32 %s31, %s38
      %s139 = sor.u32 %s137, %s138
      %p140 = scmp.eq.s32.totalorder %s139, 0
      %s142 = sadd.s32 %s141, 1
      %s143 = scalar_select %p140, %s141, %s142
      %p146 = pneg %p140
      %p147 = scmp.eq.s32.totalorder %s23, 1
      %p148 = por %p146, %p147
      %p149 = scmp.ne.s32.totalorder %s141, %s144
      %p150 = scmp.eq.s32.totalorder %s23, 0
      %p151 = por %p149, %p150
      %p152 = scmp.ne.s32.totalorder %s141, %s144
      %p153 = scmp.eq.s32.totalorder %s28, 1
      %p154 = por %p152, %p153
      %p155 = scmp.ne.s32.totalorder %s144, %s145
      %p156 = scmp.eq.s32.totalorder %s28, 0
      %p157 = por %p155, %p156
      %p158 = scmp.ne.s32.totalorder %s144, %s145
      %p159 = scmp.eq.s32.totalorder %s29, 1
      %p160 = por %p158, %p159
      %p162 = scmp.ne.s32.totalorder %s145, %s161
      %p163 = scmp.eq.s32.totalorder %s29, 0
      %p164 = por %p162, %p163
      %s165 = ssub.s32 %s30, %s42
      %s166 = ssub.s32 %s31, %s38
      %s167 = sor.u32 %s165, %s166
      %p168 = scmp.eq.s32.totalorder %s167, 0
      %s170 = sadd.s32 %s169, 1
      %s171 = scalar_select %p168, %s169, %s170
      %p174 = pneg %p168
      %p175 = scmp.eq.s32.totalorder %s23, 1
      %p176 = por %p174, %p175
      %p177 = scmp.ne.s32.totalorder %s169, %s172
      %p178 = scmp.eq.s32.totalorder %s23, 0
      %p179 = por %p177, %p178
      %p180 = scmp.ne.s32.totalorder %s169, %s172
      %p181 = scmp.eq.s32.totalorder %s28, 1
      %p182 = por %p180, %p181
      %p183 = scmp.ne.s32.totalorder %s172, %s173
      %p184 = scmp.eq.s32.totalorder %s28, 0
      %p185 = por %p183, %p184
      %p186 = scmp.ne.s32.totalorder %s172, %s173
      %p187 = scmp.eq.s32.totalorder %s29, 1
      %p188 = por %p186, %p187
      %p190 = scmp.ne.s32.totalorder %s173, %s189
      %p191 = scmp.eq.s32.totalorder %s29, 0
      %p192 = por %p190, %p191
      %s194 = sadd.s32 %s193, 1
      %p197 = scmp.eq.s32.totalorder %s23, 1
      %p198 = scmp.ne.s32.totalorder %s193, %s195
      %p199 = scmp.eq.s32.totalorder %s23, 0
      %p200 = por %p198, %p199
      %p201 = scmp.ne.s32.totalorder %s193, %s195
      %p202 = scmp.eq.s32.totalorder %s28, 1
      %p203 = por %p201, %p202
      %p204 = scmp.ne.s32.totalorder %s195, %s196
      %p205 = scmp.eq.s32.totalorder %s28, 0
      %p206 = por %p204, %p205
      %p207 = scmp.ne.s32.totalorder %s195, %s196
      %p208 = scmp.eq.s32.totalorder %s29, 1
      %p209 = por %p207, %p208
      %p211 = scmp.ne.s32.totalorder %s196, %s210
      %p212 = scmp.eq.s32.totalorder %s29, 0
      %p213 = por %p211, %p212
      %s215 = sadd.s32 %s214, 1
      %p218 = scmp.eq.s32.totalorder %s23, 1
      %p219 = scmp.ne.s32.totalorder %s214, %s216
      %p220 = scmp.eq.s32.totalorder %s23, 0
      %p221 = por %p219, %p220
      %p222 = scmp.ne.s32.totalorder %s214, %s216
      %p223 = scmp.eq.s32.totalorder %s28, 1
      %p224 = por %p222, %p223
      %p225 = scmp.ne.s32.totalorder %s216, %s217
      %p226 = scmp.eq.s32.totalorder %s28, 0
      %p227 = por %p225, %p226
      %p228 = scmp.ne.s32.totalorder %s216, %s217
      %p229 = scmp.eq.s32.totalorder %s29, 1
      %p230 = por %p228, %p229
      %p232 = scmp.ne.s32.totalorder %s217, %s231
      %p233 = scmp.eq.s32.totalorder %s29, 0
      %p234 = por %p232, %p233
      %s235 = ssub.s32 %s30, %s42
      %p236 = scmp.eq.s32.totalorder %s235, 0
      %s238 = sadd.s32 %s237, 1
      %s239 = scalar_select %p236, %s237, %s238
      %p242 = pneg %p236
      %p243 = scmp.eq.s32.totalorder %s23, 1
      %p244 = por %p242, %p243
      %p245 = scmp.ne.s32.totalorder %s237, %s240
      %p246 = scmp.eq.s32.totalorder %s23, 0
      %p247 = por %p245, %p246
      %p248 = scmp.ne.s32.totalorder %s237, %s240
      %p249 = scmp.eq.s32.totalorder %s28, 1
      %p250 = por %p248, %p249
      %p251 = scmp.ne.s32.totalorder %s240, %s241
      %p252 = scmp.eq.s32.totalorder %s28, 0
      %p253 = por %p251, %p252
      %p254 = scmp.ne.s32.totalorder %s240, %s241
      %p255 = scmp.eq.s32.totalorder %s29, 1
      %p256 = por %p254, %p255
      %p258 = scmp.ne.s32.totalorder %s241, %s257
      %p259 = scmp.eq.s32.totalorder %s29, 0
      %p260 = por %p258, %p259
      %s261 = ssub.s32 %s30, %s42
      %p262 = scmp.eq.s32.totalorder %s261, 0
      %s264 = sadd.s32 %s263, 1
      %s265 = scalar_select %p262, %s263, %s264
      %p268 = pneg %p262
      %p269 = scmp.eq.s32.totalorder %s23, 1
      %p270 = por %p268, %p269
      %p271 = scmp.ne.s32.totalorder %s263, %s266
      %p272 = scmp.eq.s32.totalorder %s23, 0
      %p273 = por %p271, %p272
      %p274 = scmp.ne.s32.totalorder %s263, %s266
      %p275 = scmp.eq.s32.totalorder %s28, 1
      %p276 = por %p274, %p275
      %p277 = scmp.ne.s32.totalorder %s266, %s267
      %p278 = scmp.eq.s32.totalorder %s28, 0
      %p279 = por %p277, %p278
      %p280 = scmp.ne.s32.totalorder %s266, %s267
      %p281 = scmp.eq.s32.totalorder %s29, 1
      %p282 = por %p280, %p281
      %p284 = scmp.ne.s32.totalorder %s267, %s283
      %p285 = scmp.eq.s32.totalorder %s29, 0
      %p286 = por %p284, %p285
      %s287 = ssub.s32 %s30, %s42
      %p288 = scmp.eq.s32.totalorder %s287, 0
      %s290 = sadd.s32 %s289, 1
      %s291 = scalar_select %p288, %s289, %s290
      %p294 = pneg %p288
      %p295 = scmp.eq.s32.totalorder %s23, 1
      %p296 = por %p294, %p295
      %p297 = scmp.ne.s32.totalorder %s289, %s292
      %p298 = scmp.eq.s32.totalorder %s23, 0
      %p299 = por %p297, %p298
      %p300 = scmp.ne.s32.totalorder %s289, %s292
      %p301 = scmp.eq.s32.totalorder %s28, 1
      %p302 = por %p300, %p301
      %p303 = scmp.ne.s32.totalorder %s292, %s293
      %p304 = scmp.eq.s32.totalorder %s28, 0
      %p305 = por %p303, %p304
      %p306 = scmp.ne.s32.totalorder %s292, %s293
      %p307 = scmp.eq.s32.totalorder %s29, 1
      %p308 = por %p306, %p307
      %p310 = scmp.ne.s32.totalorder %s293, %s309
      %p311 = scmp.eq.s32.totalorder %s29, 0
      %p312 = por %p310, %p311
      %s313 = ssub.s32 %s30, %s42
      %p314 = scmp.eq.s32.totalorder %s313, 0
      %s316 = sadd.s32 %s315, 1
      %s317 = scalar_select %p314, %s315, %s316
      %p320 = pneg %p314
      %p321 = scmp.eq.s32.totalorder %s23, 1
      %p322 = por %p320, %p321
      %p323 = scmp.ne.s32.totalorder %s315, %s318
      %p324 = scmp.eq.s32.totalorder %s23, 0
      %p325 = por %p323, %p324
      %p326 = scmp.ne.s32.totalorder %s315, %s318
      %p327 = scmp.eq.s32.totalorder %s28, 1
      %p328 = por %p326, %p327
      %p329 = scmp.ne.s32.totalorder %s318, %s319
      %p330 = scmp.eq.s32.totalorder %s28, 0
      %p331 = por %p329, %p330
      %p332 = scmp.ne.s32.totalorder %s318, %s319
      %p333 = scmp.eq.s32.totalorder %s29, 1
      %p334 = por %p332, %p333
      %p336 = scmp.ne.s32.totalorder %s319, %s335
      %p337 = scmp.eq.s32.totalorder %s29, 0
      %p338 = por %p336, %p337
      %p339 = scmp.le.s32.totalorder 1, %s23
      %p340 = scmp.lt.s32.totalorder %s23, 3
      %p341 = pnand %p339, %p340
      %p342 = pneg %p341
      // Predicated region
      $region9: #{tpu_custom_call.1} parent=5 // pred_check
        _
      $region10: #{tpu_custom_call.1} parent=5 // pred_check_branch
        %344 = sbr.rel (%p341) target = $region12
      $region11: #{tpu_custom_call.1} parent=5 // pred_region
        %s345 = ssub.s32 %s23, 1
        // Predicated region
        $region13: #{tpu_custom_call.1} parent=11 // pred_check
          %p346 = pneg %p61
        $region14: #{tpu_custom_call.1} parent=11 // pred_check_branch
          %348 = sbr.rel (%p346) target = $region16
        $region15: #{tpu_custom_call.1} parent=11 // pred_region
          %s349 = smul.u32 2, %s32
          %s351 = ssub.s32 128, 128
          %352 = vsyncadd [#allocation4], %s351
          %s353 = smul.addr %s349, 64
          %s354 = scalar_lea.hbm %s0, %s353
          %s355 = sshll.u32 [#allocation3], 4
          %s356 = int_to_ptr.vmem [resolvable:$true] %s355
          %361 = dma.hbm_to_vmem [thread:$0]  %s354, 128, %s356, [#allocation4], 64, 64, 4
        $region16: #{tpu_custom_call.1} parent=11 // pred_fallthru
          _
        // Predicated region
        $region17: #{tpu_custom_call.1} parent=11 // pred_check
          %p362 = pneg %p87
        $region18: #{tpu_custom_call.1} parent=11 // pred_check_branch
          %364 = sbr.rel (%p362) target = $region20
        $region19: #{tpu_custom_call.1} parent=11 // pred_region
          %p365 = scmp.lt.s32.totalorder %s32, 0
          %s366 = scalar_select %p365, %s32, 0
          %s367 = smul.addr %s366, 2
          %s368 = scalar_lea.vmem %s1, %s367
        $region20: #{tpu_custom_call.1} parent=11 // pred_fallthru
          _
        // Predicated region
        $region21: #{tpu_custom_call.1} parent=11 // pred_check
          %p369 = pneg %p108
        $region22: #{tpu_custom_call.1} parent=11 // pred_check_branch
          %371 = sbr.rel (%p369) target = $region24
        $region23: #{tpu_custom_call.1} parent=11 // pred_region
          %s373 = ssub.s32 512, 512
          %374 = vsyncadd [#allocation8], %s373
          %s375 = sshll.u32 [#allocation7], 4
          %s376 = int_to_ptr.vmem [resolvable:$true] %s375
          %381 = dma.hbm_to_vmem [thread:$0]  %s2, 512, %s376, [#allocation8], 128, 128, 8
        $region24: #{tpu_custom_call.1} parent=11 // pred_fallthru
          _
        // Predicated region
        $region25: #{tpu_custom_call.1} parent=11 // pred_check
          %p382 = pneg %p129
        $region26: #{tpu_custom_call.1} parent=11 // pred_check_branch
          %384 = sbr.rel (%p382) target = $region28
        $region27: #{tpu_custom_call.1} parent=11 // pred_region
          %s386 = ssub.s32 16, 16
          %387 = vsyncadd [#allocation8], %s386
          %s389 = sshll.u32 [#allocation9], 4
          %s390 = int_to_ptr.vmem [resolvable:$true] %s389
          %392 = dma.hbm_to_vmem [thread:$0]  %s3, 16, %s390, [#allocation8]
        $region28: #{tpu_custom_call.1} parent=11 // pred_fallthru
          _
        // Predicated region
        $region29: #{tpu_custom_call.1} parent=11 // pred_check
          %p393 = pneg %p206
        $region30: #{tpu_custom_call.1} parent=11 // pred_check_branch
          %395 = sbr.rel (%p393) target = $region32
        $region31: #{tpu_custom_call.1} parent=11 // pred_region
          _
        $region32: #{tpu_custom_call.1} parent=11 // pred_fallthru
          _
        // Predicated region
        $region33: #{tpu_custom_call.1} parent=11 // pred_check
          %p396 = pneg %p227
        $region34: #{tpu_custom_call.1} parent=11 // pred_check_branch
          %398 = sbr.rel (%p396) target = $region36
        $region35: #{tpu_custom_call.1} parent=11 // pred_region
          _
        $region36: #{tpu_custom_call.1} parent=11 // pred_fallthru
          _
      $region12: #{tpu_custom_call.1} parent=5 // pred_fallthru
        _
      %p399 = scmp.lt.s32.totalorder %s23, 2
      // Predicated region
      $region37: #{tpu_custom_call.1} parent=5 // pred_check
        %p400 = pneg %p399
      $region38: #{tpu_custom_call.1} parent=5 // pred_check_branch
        %402 = sbr.rel (%p400) target = $region40
      $region39: #{tpu_custom_call.1} parent=5 // pred_region
        // Predicated region
        $region41: #{tpu_custom_call.1} parent=39 // pred_check
          %p403 = pneg %p151
        $region42: #{tpu_custom_call.1} parent=39 // pred_check_branch
          %405 = sbr.rel (%p403) target = $region44
        $region43: #{tpu_custom_call.1} parent=39 // pred_region
          %s406 = sand.u32 %s141, 1
          %s407 = sand.u32 %s141, 1
          %s408 = smul.addr %s407, 4
          %s409 = scalar_lea.vmem [#allocation10], %s408
          %s410 = smul.u32 2, %s30
          %s411 = smul.addr %s410, 2
          %s412 = sadd.s32 %s31, %s411
          %s413 = smul.addr %s412, 2
          %s414 = scalar_lea.vmem %s4, %s413
          // Predicated region
          $region45: #{tpu_custom_call.1} parent=43 // pred_check
            _
          $region46: #{tpu_custom_call.1} parent=43 // pred_check_branch
            %416 = sbr.rel (0) target = $region48
          $region47: #{tpu_custom_call.1} parent=43 // pred_region
            // Predicated region
            $region49: #{tpu_custom_call.1} parent=47 // pred_check
              _
            $region50: #{tpu_custom_call.1} parent=47 // pred_check_branch
              %418 = sbr.rel target = $region52
            $region51: #{tpu_custom_call.1} parent=47 // pred_region
              // Predicated region
              $region64: #{tpu_custom_call.1} parent=51 // pred_check
                _
              $region65: #{tpu_custom_call.1} parent=51 // pred_check_branch
                %435 = sbr.rel (0) target = $region67
              $region66: #{tpu_custom_call.1} parent=51 // pred_region
                loop: start=0, step=1, limit=1
                $region68: #{tpu_custom_call.1} parent=66 // loop_pre_header
                  _
                $region69: #{tpu_custom_call.1} parent=66 // loop_header
                  %s438 = sphi 0, %s442
                  %p439 = scmp.ge.s32.totalorder %s438, 1
                  %s443 = sphi %s414, %s414
                  %s444 = sphi %s409, %s409
                $region70: #{tpu_custom_call.1} parent=66 // loop_header_branch
                  %441 = sbr.rel (%p439) target = $region74
                $region71: #{tpu_custom_call.1} parent=66 // loop_body
                  %v445 = vld [vmem:[%s443] sm:$0x3]
                  %446 = vst [vmem:[%s444] sm:$0x3] %v445
                  %v447 = vld [vmem:[%s443 + $0x4] sm:$0x3]
                  %448 = vst [vmem:[%s444 + $0x2] sm:$0x3] %v447
                $region72: #{tpu_custom_call.1} parent=66 // loop_footer
                  %s442 = sadd.s32 1, %s438
                $region73: #{tpu_custom_call.1} parent=66 // loop_footer_branch
                  %437 = sbr.rel target = $region69
                $region74: #{tpu_custom_call.1} parent=66 // loop_exit
                  _
              $region67: #{tpu_custom_call.1} parent=51 // pred_fallthru
                _
            $region52: #{tpu_custom_call.1} parent=47 // pred_fallthru
              _
            // Predicated region
            $region53: #{tpu_custom_call.1} parent=47 // pred_check
              _
            $region54: #{tpu_custom_call.1} parent=47 // pred_check_branch
              %420 = sbr.rel (0) target = $region56
            $region55: #{tpu_custom_call.1} parent=47 // pred_region
              loop: start=0, step=1, limit=1
              $region57: #{tpu_custom_call.1} parent=55 // loop_pre_header
                _
              $region58: #{tpu_custom_call.1} parent=55 // loop_header
                %s423 = sphi 0, %s427
                %p424 = scmp.ge.s32.totalorder %s423, 1
                %s428 = sphi %s414, %s414
                %s429 = sphi %s409, %s409
              $region59: #{tpu_custom_call.1} parent=55 // loop_header_branch
                %426 = sbr.rel (%p424) target = $region63
              $region60: #{tpu_custom_call.1} parent=55 // loop_body
                %v430 = vld [vmem:[%s428] sm:$0x3]
                %431 = vst [vmem:[%s429] sm:$0x3] %v430
                %v432 = vld [vmem:[%s428 + $0x4] sm:$0x3]
                %433 = vst [vmem:[%s429 + $0x2] sm:$0x3] %v432
              $region61: #{tpu_custom_call.1} parent=55 // loop_footer
                %s427 = sadd.s32 1, %s423
              $region62: #{tpu_custom_call.1} parent=55 // loop_footer_branch
                %422 = sbr.rel target = $region58
              $region63: #{tpu_custom_call.1} parent=55 // loop_exit
                _
            $region56: #{tpu_custom_call.1} parent=47 // pred_fallthru
              _
          $region48: #{tpu_custom_call.1} parent=43 // pred_fallthru
            _
          %449 = vnop
        $region44: #{tpu_custom_call.1} parent=39 // pred_fallthru
          _
        // Predicated region
        $region75: #{tpu_custom_call.1} parent=39 // pred_check
          %p450 = pneg %p179
        $region76: #{tpu_custom_call.1} parent=39 // pred_check_branch
          %452 = sbr.rel (%p450) target = $region78
        $region77: #{tpu_custom_call.1} parent=39 // pred_region
          %s453 = sand.u32 %s169, 1
          %s454 = sand.u32 %s169, 1
          %s455 = smul.addr %s454, 4
          %s456 = scalar_lea.vmem [#allocation11], %s455
          %s457 = smul.u32 2, %s30
          %s458 = smul.addr %s457, 2
          %s459 = sadd.s32 %s31, %s458
          %s460 = smul.addr %s459, 2
          %s461 = scalar_lea.vmem %s5, %s460
          // Predicated region
          $region79: #{tpu_custom_call.1} parent=77 // pred_check
            _
          $region80: #{tpu_custom_call.1} parent=77 // pred_check_branch
            %463 = sbr.rel (0) target = $region82
          $region81: #{tpu_custom_call.1} parent=77 // pred_region
            // Predicated region
            $region83: #{tpu_custom_call.1} parent=81 // pred_check
              _
            $region84: #{tpu_custom_call.1} parent=81 // pred_check_branch
              %465 = sbr.rel target = $region86
            $region85: #{tpu_custom_call.1} parent=81 // pred_region
              // Predicated region
              $region98: #{tpu_custom_call.1} parent=85 // pred_check
                _
              $region99: #{tpu_custom_call.1} parent=85 // pred_check_branch
                %482 = sbr.rel (0) target = $region101
              $region100: #{tpu_custom_call.1} parent=85 // pred_region
                loop: start=0, step=1, limit=1
                $region102: #{tpu_custom_call.1} parent=100 // loop_pre_header
                  _
                $region103: #{tpu_custom_call.1} parent=100 // loop_header
                  %s485 = sphi 0, %s489
                  %p486 = scmp.ge.s32.totalorder %s485, 1
                  %s490 = sphi %s461, %s461
                  %s491 = sphi %s456, %s456
                $region104: #{tpu_custom_call.1} parent=100 // loop_header_branch
                  %488 = sbr.rel (%p486) target = $region108
                $region105: #{tpu_custom_call.1} parent=100 // loop_body
                  %v492 = vld [vmem:[%s490] sm:$0x3]
                  %493 = vst [vmem:[%s491] sm:$0x3] %v492
                  %v494 = vld [vmem:[%s490 + $0x4] sm:$0x3]
                  %495 = vst [vmem:[%s491 + $0x2] sm:$0x3] %v494
                $region106: #{tpu_custom_call.1} parent=100 // loop_footer
                  %s489 = sadd.s32 1, %s485
                $region107: #{tpu_custom_call.1} parent=100 // loop_footer_branch
                  %484 = sbr.rel target = $region103
                $region108: #{tpu_custom_call.1} parent=100 // loop_exit
                  _
              $region101: #{tpu_custom_call.1} parent=85 // pred_fallthru
                _
            $region86: #{tpu_custom_call.1} parent=81 // pred_fallthru
              _
            // Predicated region
            $region87: #{tpu_custom_call.1} parent=81 // pred_check
              _
            $region88: #{tpu_custom_call.1} parent=81 // pred_check_branch
              %467 = sbr.rel (0) target = $region90
            $region89: #{tpu_custom_call.1} parent=81 // pred_region
              loop: start=0, step=1, limit=1
              $region91: #{tpu_custom_call.1} parent=89 // loop_pre_header
                _
              $region92: #{tpu_custom_call.1} parent=89 // loop_header
                %s470 = sphi 0, %s474
                %p471 = scmp.ge.s32.totalorder %s470, 1
                %s475 = sphi %s461, %s461
                %s476 = sphi %s456, %s456
              $region93: #{tpu_custom_call.1} parent=89 // loop_header_branch
                %473 = sbr.rel (%p471) target = $region97
              $region94: #{tpu_custom_call.1} parent=89 // loop_body
                %v477 = vld [vmem:[%s475] sm:$0x3]
                %478 = vst [vmem:[%s476] sm:$0x3] %v477
                %v479 = vld [vmem:[%s475 + $0x4] sm:$0x3]
                %480 = vst [vmem:[%s476 + $0x2] sm:$0x3] %v479
              $region95: #{tpu_custom_call.1} parent=89 // loop_footer
                %s474 = sadd.s32 1, %s470
              $region96: #{tpu_custom_call.1} parent=89 // loop_footer_branch
                %469 = sbr.rel target = $region92
              $region97: #{tpu_custom_call.1} parent=89 // loop_exit
                _
            $region90: #{tpu_custom_call.1} parent=81 // pred_fallthru
              _
          $region82: #{tpu_custom_call.1} parent=77 // pred_fallthru
            _
          %496 = vnop
        $region78: #{tpu_custom_call.1} parent=39 // pred_fallthru
          _
      $region40: #{tpu_custom_call.1} parent=5 // pred_fallthru
        _
      %p497 = scmp.le.s32.totalorder 1, %s23
      %p498 = scmp.lt.s32.totalorder %s23, 3
      %p499 = pnand %p497, %p498
      %p500 = pneg %p499
      // Predicated region
      $region109: #{tpu_custom_call.1} parent=5 // pred_check
        _
      $region110: #{tpu_custom_call.1} parent=5 // pred_check_branch
        %502 = sbr.rel (%p499) target = $region112
      $region111: #{tpu_custom_call.1} parent=5 // pred_region
        %s503 = ssub.s32 %s23, 1
        // Predicated region
        $region113: #{tpu_custom_call.1} parent=111 // pred_check
          %p504 = pneg %p61
        $region114: #{tpu_custom_call.1} parent=111 // pred_check_branch
          %506 = sbr.rel (%p504) target = $region116
        $region115: #{tpu_custom_call.1} parent=111 // pred_region
          %507 = dma.done [#allocation4], 128
        $region116: #{tpu_custom_call.1} parent=111 // pred_fallthru
          _
        // Predicated region
        $region117: #{tpu_custom_call.1} parent=111 // pred_check
          %p508 = pneg %p108
        $region118: #{tpu_custom_call.1} parent=111 // pred_check_branch
          %510 = sbr.rel (%p508) target = $region120
        $region119: #{tpu_custom_call.1} parent=111 // pred_region
          %511 = dma.done [#allocation8], 512
        $region120: #{tpu_custom_call.1} parent=111 // pred_fallthru
          _
        // Predicated region
        $region121: #{tpu_custom_call.1} parent=111 // pred_check
          %p512 = pneg %p129
        $region122: #{tpu_custom_call.1} parent=111 // pred_check_branch
          %514 = sbr.rel (%p512) target = $region124
        $region123: #{tpu_custom_call.1} parent=111 // pred_region
          %515 = dma.done [#allocation8], 16
        $region124: #{tpu_custom_call.1} parent=111 // pred_fallthru
          _
        %s516 = sand.u32 %s144, 1
        %s517 = sand.u32 %s144, 1
        %s518 = smul.addr %s517, 4
        %s519 = scalar_lea.vmem [#allocation10], %s518
        // Predicated region
        $region125: #{tpu_custom_call.1} parent=111 // pred_check
          %p520 = pneg %p157
        $region126: #{tpu_custom_call.1} parent=111 // pred_check_branch
          %522 = sbr.rel (%p520) target = $region128
        $region127: #{tpu_custom_call.1} parent=111 // pred_region
          _
        $region128: #{tpu_custom_call.1} parent=111 // pred_fallthru
          _
        %s523 = sand.u32 %s172, 1
        %s524 = sand.u32 %s172, 1
        %s525 = smul.addr %s524, 4
        %s526 = scalar_lea.vmem [#allocation11], %s525
        // Predicated region
        $region129: #{tpu_custom_call.1} parent=111 // pred_check
          %p527 = pneg %p185
        $region130: #{tpu_custom_call.1} parent=111 // pred_check_branch
          %529 = sbr.rel (%p527) target = $region132
        $region131: #{tpu_custom_call.1} parent=111 // pred_region
          _
        $region132: #{tpu_custom_call.1} parent=111 // pred_fallthru
          _
        %p530 = pneg %p61
        %p531 = pneg %p58
        %p532 = scmp.lt.s32.totalorder %s32, 0
        %s533 = scalar_select %p532, %s32, 0
        %s534 = smul.addr %s533, 2
        %s535 = scalar_lea.vmem %s1, %s534
        %p536 = pneg %p87
        %p537 = pneg %p84
        %p538 = pneg %p108
        %p539 = pneg %p105
        %p540 = pneg %p129
        %p541 = pneg %p126
        %s542 = sand.u32 %s144, 1
        %s543 = sand.u32 %s144, 1
        %s544 = smul.addr %s543, 4
        %s545 = scalar_lea.vmem [#allocation10], %s544
        %p546 = pneg %p157
        %p547 = pneg %p154
        %s548 = sand.u32 %s172, 1
        %s549 = sand.u32 %s172, 1
        %s550 = smul.addr %s549, 4
        %s551 = scalar_lea.vmem [#allocation11], %s550
        %p552 = pneg %p185
        %p553 = pneg %p182
        %p554 = pneg %p206
        %p555 = pneg %p203
        %p556 = pneg %p227
        %p557 = pneg %p224
        %p558 = pneg %p253
        %p559 = pneg %p250
        %p560 = pneg %p279
        %p561 = pneg %p276
        %p562 = pneg %p305
        %p563 = pneg %p302
        %p564 = pneg %p331
        %p565 = pneg %p328
        %s566 = smul.u32 2, %s32
        %p567 = scmp.lt.s32.totalorder %s32, 0
        %s568 = scalar_select %p567, %s32, 0
        %s569 = smul.addr %s568, 2
        %s570 = scalar_lea.vmem %s1, %s569
        %s571 = smul.u32 2, %s32
        %s572 = smul.u32 2, %s32
        %p573 = scmp.eq.s32.totalorder %s33, 0
        // Predicated region
        $region133: #{tpu_custom_call.1} parent=111 // pred_check
          %p574 = pneg %p573
        $region134: #{tpu_custom_call.1} parent=111 // pred_check_branch
          %576 = sbr.rel (%p574) target = $region136
        $region135: #{tpu_custom_call.1} parent=111 // pred_region
          %577 = vst [vmem:[#allocation2] sm:$0xf] 0.0
          %578 = vst [vmem:[#allocation2 + $0x4] sm:$0xf] 0.0
          %579 = vst [vmem:[#allocation2 + $0x8] sm:$0xf] 0.0
          %580 = vst [vmem:[#allocation2 + $0xc] sm:$0xf] 0.0
        $region136: #{tpu_custom_call.1} parent=111 // pred_fallthru
          _
        %v581 = vld [vmem:[#allocation2] sm:$0xf]
        %v582 = vld [vmem:[#allocation2 + $0x4] sm:$0xf]
        %v583 = vld [vmem:[%s519] sm:$0x3]
        %v584 = vld [vmem:[%s519 + $0x2] sm:$0x3]
        %v585 = vunpack.c.l.bf16 %v583
        %v586 = vunpack.c.l.bf16 %v584
        %v587 = vadd.f32 %v581, %v585
        %v588 = vadd.f32 %v582, %v586
        %589 = vst [vmem:[#allocation2] sm:$0xf] %v587
        %590 = vst [vmem:[#allocation2 + $0x4] sm:$0xf] %v588
        %s591 = scalar_lea.vmem [#allocation2], 8
        %v592 = vld [vmem:[%s591] sm:$0xf]
        %v593 = vld [vmem:[%s591 + $0x4] sm:$0xf]
        %v594 = vld [vmem:[%s526] sm:$0x3]
        %v595 = vld [vmem:[%s526 + $0x2] sm:$0x3]
        %v596 = vunpack.c.l.bf16 %v594
        %v597 = vunpack.c.l.bf16 %v595
        %v598 = vadd.f32 %v592, %v596
        %v599 = vadd.f32 %v593, %v597
        %600 = vst [vmem:[%s591] sm:$0xf] %v598
        %601 = vst [vmem:[%s591 + $0x4] sm:$0xf] %v599
        %p602 = scmp.eq.s32.totalorder %s33, 1
        // Predicated region
        $region137: #{tpu_custom_call.1} parent=111 // pred_check
          %p603 = pneg %p602
        $region138: #{tpu_custom_call.1} parent=111 // pred_check_branch
          %605 = sbr.rel (%p603) target = $region140
        $region139: #{tpu_custom_call.1} parent=111 // pred_region
          %v606 = vld [vmem:[#allocation2] sm:$0xf]
          %v607 = vld [vmem:[#allocation2 + $0x4] sm:$0xf]
          %v608 = vld [vmem:[#allocation2 + $0x8] sm:$0xf]
          %v609 = vld [vmem:[#allocation2 + $0xc] sm:$0xf]
          %vm610 = vcmask 1043456
          %v611 = vsel %vm610, %v606, 0.0
          %612 = vadd.xlane.f32.xlu0 %v611
          %v613 = vpop.xlane.xlu0 %612
          %v614 = vsel %vm610, %v607, 0.0
          %615 = vadd.xlane.f32.xlu0 %v614
          %v616 = vpop.xlane.xlu0 %615
          %v617 = vsel %vm610, %v608, 0.0
          %618 = vadd.xlane.f32.xlu0 %v617
          %v619 = vpop.xlane.xlu0 %618
          %v620 = vsel %vm610, %v609, 0.0
          %621 = vadd.xlane.f32.xlu0 %v620
          %v622 = vpop.xlane.xlu0 %621
          %v623 = vmul.f32 %v613, 0.00390625
          %v624 = vmul.f32 %v616, 0.00390625
          %v625 = vmul.f32 %v619, 0.00390625
          %v626 = vmul.f32 %v622, 0.00390625
          %v627 = vld [vmem:[%s6] sm:$0xf]
          %v628 = vld [vmem:[%s7] sm:$0x1]
          %v630 = vlaneseq
          %v631 = vshrl.u32 %v630, 7
          %v632 = vsub.s32 0, %v631
          %v633 = vrot.slane %v628, %v632
          %v639 = vlaneseq
          %v640 = vand.u32 %v639, 127
          %v641 = vlaneseq
          %v642 = vshrl.u32 %v641, 7
          %v643 = vsub.s32 %v640, %v642
          %v644 = vrot.slane %v623, %v643
          %v645 = vlaneseq
          %v646 = vshrl.u32 %v645, 7
          %v647 = vsub.s32 %v640, %v646
          %v648 = vrot.slane %v624, %v647
          %v649 = vlaneseq
          %v650 = vshrl.u32 %v649, 7
          %v651 = vsub.s32 %v640, %v650
          %v652 = vrot.slane %v625, %v651
          %v653 = vlaneseq
          %v654 = vshrl.u32 %v653, 7
          %v655 = vsub.s32 %v640, %v654
          %v656 = vrot.slane %v626, %v655
          %vm657 = vcmask 1041409
          %v658 = vsel %vm657, %v648, %v644
          %vm659 = vcmask 1042434
          %v660 = vsel %vm659, %v652, %v658
          %vm661 = vcmask 1043459
          %v662 = vsel %vm661, %v656, %v660
          %vm663 = vcmask 31744
          %v664 = vsel %vm663, %v662, 0
          %v667 = vsel %vm610, %v627, 0
          %669 = vmatprep.subr.mxu0 0.0
          %670 = vmatpush1.msra.mxu0 %v667
          %671 = vmatprep.subr.mxu0 0.0
          %672 = vmatpush1.msra.mxu0 0.0
          %673 = vmatprep.subr.mxu0 0.0
          %674 = vmatpush1.msra.mxu0 0.0
          %675 = vmatprep.subr.mxu0 0.0
          %676 = vmatpush1.msra.mxu0 0.0
          %677 = vmatprep.subr.mxu0 0.0
          %678 = vmatpush1.msra.mxu0 0.0
          %679 = vmatprep.subr.mxu0 0.0
          %680 = vmatpush1.msra.mxu0 0.0
          %681 = vmatprep.subr.mxu0 0.0
          %682 = vmatpush1.msra.mxu0 0.0
          %683 = vmatprep.subr.mxu0 0.0
          %684 = vmatpush1.msra.mxu0 0.0
          %685 = vmatprep.subr.mxu0 0.0
          %686 = vmatpush1.msra.mxu0 0.0
          %687 = vmatprep.subr.mxu0 0.0
          %688 = vmatpush1.msra.mxu0 0.0
          %689 = vmatprep.subr.mxu0 0.0
          %690 = vmatpush1.msra.mxu0 0.0
          %691 = vmatprep.subr.mxu0 0.0
          %692 = vmatpush1.msra.mxu0 0.0
          %693 = vmatprep.subr.mxu0 0.0
          %694 = vmatpush1.msra.mxu0 0.0
          %695 = vmatprep.subr.mxu0 0.0
          %696 = vmatpush1.msra.mxu0 0.0
          %697 = vmatprep.subr.mxu0 0.0
          %698 = vmatpush1.msra.mxu0 0.0
          %699 = vmatprep.subr.mxu0 0.0
          %700 = vmatpush1.msra.mxu0 0.0
          %701 = vmatprep.subr.mxu0 0.0
          %702 = vmatpush1.msra.mxu0 0.0
          %703 = vmatprep.subr.mxu0 0.0
          %704 = vmatpush1.msra.mxu0 0.0
          %705 = vmatprep.subr.mxu0 0.0
          %706 = vmatpush1.msra.mxu0 0.0
          %707 = vmatprep.subr.mxu0 0.0
          %708 = vmatpush1.msra.mxu0 0.0
          %709 = vmatprep.subr.mxu0 0.0
          %710 = vmatpush1.msra.mxu0 0.0
          %711 = vmatprep.subr.mxu0 0.0
          %712 = vmatpush1.msra.mxu0 0.0
          %713 = vmatprep.subr.mxu0 0.0
          %714 = vmatpush1.msra.mxu0 0.0
          %715 = vmatprep.subr.mxu0 0.0
          %716 = vmatpush1.msra.mxu0 0.0
          %717 = vmatprep.subr.mxu0 0.0
          %718 = vmatpush1.msra.mxu0 0.0
          %719 = vmatprep.subr.mxu0 0.0
          %720 = vmatpush1.msra.mxu0 0.0
          %721 = vmatprep.subr.mxu0 0.0
          %722 = vmatpush1.msra.mxu0 0.0
          %723 = vmatprep.subr.mxu0 0.0
          %724 = vmatpush1.msra.mxu0 0.0
          %725 = vmatprep.subr.mxu0 0.0
          %726 = vmatpush1.msra.mxu0 0.0
          %727 = vmatprep.subr.mxu0 0.0
          %728 = vmatpush1.msra.mxu0 0.0
          %729 = vmatprep.subr.mxu0 0.0
          %730 = vmatpush1.msra.mxu0 0.0
          %731 = vmatprep.subr.mxu0 0.0
          %732 = vmatpush1.msra.mxu0 0.0
          %733 = vmatprep.mubr.f32.mxu0 0.0
          %734 = vmatmul.mubr.f32.gmra.mrb[0].mxu0 %v664
          %v735 = vpop.f32.mrb[0].mxu0
          %v736 = vadd.f32 %v633, %v735
          %v737 = vpop.f32.mrb[0].mxu0
          %738 = vdwg.mxu0
          %v739 = vld [vmem:[#allocation3] sm:$0xf]
          %v740 = vld [vmem:[#allocation3 + $0x4] sm:$0xf]
          %v741 = vunpack.c.l.bf16 %v739
          %v742 = vunpack.c.l.bf16 %v740
          %v743 = vld [vmem:[%s570] sm:$0x3]
          %v744 = vlaneseq
          %v745 = vshrl.u32 %v744, 7
          %v746 = vsub.s32 0, %v745
          %v747 = vrot.slane %v743, %v746
          %749 = vbcast.lane.b32.xlu0 %v747, 256
          %v750 = vpop.permute.xlu0 %749
          %v751 = vlaneseq
          %v752 = vshrl.u32 %v751, 7
          %v753 = vsub.s32 1, %v752
          %v754 = vrot.slane %v743, %v753
          %756 = vbcast.lane.b32.xlu0 %v754, 256
          %v757 = vpop.permute.xlu0 %756
          %v758 = vrot.slane %v750, 4
          %v759 = vadd.f32 %v750, %v758
          %v760 = vrot.slane %v759, 2
          %v761 = vadd.f32 %v759, %v760
          %v762 = vrot.slane %v761, 1
          %v763 = vadd.f32 %v761, %v762
          %v764 = vrot.slane %v757, 4
          %v765 = vadd.f32 %v757, %v764
          %v766 = vrot.slane %v765, 2
          %v767 = vadd.f32 %v765, %v766
          %v768 = vrot.slane %v767, 1
          %v769 = vadd.f32 %v767, %v768
          %v770 = vmax.f32 %v763, 1e-09
          %v771 = vmax.f32 %v769, 1e-09
          %v772 = vmul.f32 %v741, %v750
          %v773 = vmul.f32 %v742, %v757
          %vm774 = vcmask 261120
          %v775 = vsel %vm774, %v772, 0.0
          %v776 = vrot.slane %v775, 4
          %v777 = vadd.f32 %v775, %v776
          %v778 = vrot.slane %v777, 2
          %v779 = vadd.f32 %v777, %v778
          %v780 = vrot.slane %v779, 1
          %v781 = vadd.f32 %v779, %v780
          %v782 = vsel %vm774, %v773, 0.0
          %v783 = vrot.slane %v782, 4
          %v784 = vadd.f32 %v782, %v783
          %v785 = vrot.slane %v784, 2
          %v786 = vadd.f32 %v784, %v785
          %v787 = vrot.slane %v786, 1
          %v788 = vadd.f32 %v786, %v787
          %v789 = vrcp.pop %v770
          %v790 = vmul.f32 %v781, %v789
          %v791 = vrcp.pop %v771
          %v792 = vmul.f32 %v788, %v791
          %v793 = vld [vmem:[#allocation7] sm:$0xff]
          %v794 = vld [vmem:[#allocation7 + $0x8] sm:$0xff]
          %v795 = vld [vmem:[#allocation7 + $0x10] sm:$0xff]
          %v796 = vld [vmem:[#allocation7 + $0x18] sm:$0xff]
          %v797 = vld [vmem:[#allocation9] sm:$0x1]
          %v799 = vlaneseq
          %v800 = vshrl.u32 %v799, 7
          %v801 = vsub.s32 0, %v800
          %v802 = vrot.slane %v797, %v801
          %v806 = vsel %vm657, %v792, %v790
          %v807 = vsel %vm774, %v806, 0
          %809 = vmatprep.subr.mxu0 0.0
          %810 = vmatpush1.msra.mxu0 %v793
          %811 = vmatprep.subr.mxu0 0.0
          %812 = vmatpush1.msra.mxu0 %v794
          %813 = vmatprep.subr.mxu0 0.0
          %814 = vmatpush1.msra.mxu0 %v795
          %815 = vmatprep.subr.mxu0 0.0
          %816 = vmatpush1.msra.mxu0 %v796
          %817 = vmatprep.subr.mxu0 0.0
          %818 = vmatpush1.msra.mxu0 0.0
          %819 = vmatprep.subr.mxu0 0.0
          %820 = vmatpush1.msra.mxu0 0.0
          %821 = vmatprep.subr.mxu0 0.0
          %822 = vmatpush1.msra.mxu0 0.0
          %823 = vmatprep.subr.mxu0 0.0
          %824 = vmatpush1.msra.mxu0 0.0
          %825 = vmatprep.subr.mxu0 0.0
          %826 = vmatpush1.msra.mxu0 0.0
          %827 = vmatprep.subr.mxu0 0.0
          %828 = vmatpush1.msra.mxu0 0.0
          %829 = vmatprep.subr.mxu0 0.0
          %830 = vmatpush1.msra.mxu0 0.0
          %831 = vmatprep.subr.mxu0 0.0
          %832 = vmatpush1.msra.mxu0 0.0
          %833 = vmatprep.subr.mxu0 0.0
          %834 = vmatpush1.msra.mxu0 0.0
          %835 = vmatprep.subr.mxu0 0.0
          %836 = vmatpush1.msra.mxu0 0.0
          %837 = vmatprep.subr.mxu0 0.0
          %838 = vmatpush1.msra.mxu0 0.0
          %839 = vmatprep.subr.mxu0 0.0
          %840 = vmatpush1.msra.mxu0 0.0
          %841 = vmatprep.subr.mxu0 0.0
          %842 = vmatpush1.msra.mxu0 0.0
          %843 = vmatprep.subr.mxu0 0.0
          %844 = vmatpush1.msra.mxu0 0.0
          %845 = vmatprep.subr.mxu0 0.0
          %846 = vmatpush1.msra.mxu0 0.0
          %847 = vmatprep.subr.mxu0 0.0
          %848 = vmatpush1.msra.mxu0 0.0
          %849 = vmatprep.subr.mxu0 0.0
          %850 = vmatpush1.msra.mxu0 0.0
          %851 = vmatprep.subr.mxu0 0.0
          %852 = vmatpush1.msra.mxu0 0.0
          %853 = vmatprep.subr.mxu0 0.0
          %854 = vmatpush1.msra.mxu0 0.0
          %855 = vmatprep.subr.mxu0 0.0
          %856 = vmatpush1.msra.mxu0 0.0
          %857 = vmatprep.subr.mxu0 0.0
          %858 = vmatpush1.msra.mxu0 0.0
          %859 = vmatprep.subr.mxu0 0.0
          %860 = vmatpush1.msra.mxu0 0.0
          %861 = vmatprep.subr.mxu0 0.0
          %862 = vmatpush1.msra.mxu0 0.0
          %863 = vmatprep.subr.mxu0 0.0
          %864 = vmatpush1.msra.mxu0 0.0
          %865 = vmatprep.subr.mxu0 0.0
          %866 = vmatpush1.msra.mxu0 0.0
          %867 = vmatprep.subr.mxu0 0.0
          %868 = vmatpush1.msra.mxu0 0.0
          %869 = vmatprep.subr.mxu0 0.0
          %870 = vmatpush1.msra.mxu0 0.0
          %871 = vmatprep.subr.mxu0 0.0
          %872 = vmatpush1.msra.mxu0 0.0
          %873 = vmatprep.mubr.f32.mxu0 0.0
          %874 = vmatmul.mubr.f32.gmra.mrb[0].mxu0 %v807
          %v875 = vpop.f32.mrb[0].mxu0
          %v876 = vadd.f32 %v802, %v875
          %v877 = vpop.f32.mrb[0].mxu0
          %878 = vdwg.mxu0
          %v879 = vsub.f32 %v876, %v736
          %v880 = vadd.f32 %v879, 1e-06
          %v881 = vmul.f32 %v880, %v880
          %vm882 = vcmask 1041408
          %v883 = vsel %vm882, %v881, 0.0
          %884 = vadd.xlane.f32.xlu0 %v883
          %v885 = vpop.xlane.xlu0 %884
          %v886 = vrsqrt.pop %v885
          %v887 = vmul.f32 %v885, %v886
          %vm888 = vcmp.eq.f32.partialorder %v885, inf
          %v889 = vsel %vm888, %v885, %v887
          %vm890 = vcmp.eq.f32.partialorder %v885, 0.0
          %v891 = vand.u32 %v885, 2147483648
          %v892 = vsel %vm890, %v891, %v889
          %v894 = vrot.slane %v736, 2
          %v896 = vsub.f32 %v876, %v894
          %v897 = vadd.f32 %v896, 1e-06
          %v898 = vmul.f32 %v897, %v897
          %v899 = vsel %vm882, %v898, 0.0
          %900 = vadd.xlane.f32.xlu0 %v899
          %v901 = vpop.xlane.xlu0 %900
          %v902 = vrsqrt.pop %v901
          %v903 = vmul.f32 %v901, %v902
          %vm904 = vcmp.eq.f32.partialorder %v901, inf
          %v905 = vsel %vm904, %v901, %v903
          %vm906 = vcmp.eq.f32.partialorder %v901, 0.0
          %v907 = vand.u32 %v901, 2147483648
          %v908 = vsel %vm906, %v907, %v905
          %v909 = vsub.f32 %v892, %v908
          %v910 = vadd.f32 %v909, 1.0
          %v911 = vmax.f32 %v910, 0.0
          %vm912 = vcmask 1024
          %v913 = vsel %vm912, %v911, 0.0
          %914 = vadd.xlane.f32.xlu0 %v913
          %v915 = vpop.xlane.xlu0 %914
          %v916 = vrot.slane %v915, 4
          %v917 = vadd.f32 %v915, %v916
          %v918 = vrot.slane %v917, 2
          %v919 = vadd.f32 %v917, %v918
          %v920 = vrot.slane %v919, 1
          %v921 = vadd.f32 %v919, %v920
          %s922 = vtos %v921
          %s923 = scalar_lea.smem [#allocation16], 0
          %924 = sst [smem:[%s923]] %s922
          %925 = vst [vmem:[#allocation12] sm:$0x3] %v876
          %926 = vst [vmem:[#allocation13] sm:$0x3] %v736
          %927 = vst [vmem:[#allocation15 - $0x2] sm:$0xc] %v736
        $region140: #{tpu_custom_call.1} parent=111 // pred_fallthru
          _
        // Predicated region
        $region141: #{tpu_custom_call.1} parent=111 // pred_check
          %p928 = pneg %p250
        $region142: #{tpu_custom_call.1} parent=111 // pred_check_branch
          %930 = sbr.rel (%p928) target = $region144
        $region143: #{tpu_custom_call.1} parent=111 // pred_region
          %s932 = ssub.s32 32, 32
          %933 = vsyncadd [#allocation5], %s932
          %s934 = smul.addr %s32, 32
          %s935 = scalar_lea.hbm %s8, %s934
          %s937 = sshll.u32 [#allocation12], 4
          %s938 = int_to_ptr.vmem [resolvable:$true] %s937
          %940 = dma.vmem_to_hbm [thread:$0]  %s938, 32, %s935, [#allocation5]
        $region144: #{tpu_custom_call.1} parent=111 // pred_fallthru
          _
        // Predicated region
        $region145: #{tpu_custom_call.1} parent=111 // pred_check
          %p941 = pneg %p276
        $region146: #{tpu_custom_call.1} parent=111 // pred_check_branch
          %943 = sbr.rel (%p941) target = $region148
        $region147: #{tpu_custom_call.1} parent=111 // pred_region
          %s945 = ssub.s32 32, 32
          %946 = vsyncadd [#allocation14], %s945
          %s947 = smul.addr %s32, 32
          %s948 = scalar_lea.hbm %s9, %s947
          %s950 = sshll.u32 [#allocation13], 4
          %s951 = int_to_ptr.vmem [resolvable:$true] %s950
          %953 = dma.vmem_to_hbm [thread:$0]  %s951, 32, %s948, [#allocation14]
        $region148: #{tpu_custom_call.1} parent=111 // pred_fallthru
          _
        // Predicated region
        $region149: #{tpu_custom_call.1} parent=111 // pred_check
          %p954 = pneg %p302
        $region150: #{tpu_custom_call.1} parent=111 // pred_check_branch
          %956 = sbr.rel (%p954) target = $region152
        $region151: #{tpu_custom_call.1} parent=111 // pred_region
          %s958 = ssub.s32 32, 32
          %959 = vsyncadd [#allocation14], %s958
          %s960 = smul.addr %s32, 32
          %s961 = scalar_lea.hbm %s10, %s960
          %s963 = sshll.u32 [#allocation15], 4
          %s964 = int_to_ptr.vmem [resolvable:$true] %s963
          %966 = dma.vmem_to_hbm [thread:$0]  %s964, 32, %s961, [#allocation14]
        $region152: #{tpu_custom_call.1} parent=111 // pred_fallthru
          _
        // Predicated region
        $region153: #{tpu_custom_call.1} parent=111 // pred_check
          %p967 = pneg %p328
        $region154: #{tpu_custom_call.1} parent=111 // pred_check_branch
          %969 = sbr.rel (%p967) target = $region156
        $region155: #{tpu_custom_call.1} parent=111 // pred_region
          %s971 = ssub.s32 16, 16
          %972 = vsyncadd [#allocation6], %s971
          %s973 = smul.addr %s32, 16
          %s974 = scalar_lea.hbm %s11, %s973
          %977 = dma.smem_to_hbm [#allocation16], 16, %s974, [#allocation6]
        $region156: #{tpu_custom_call.1} parent=111 // pred_fallthru
          _
        // Predicated region
        $region157: #{tpu_custom_call.1} parent=111 // pred_check
          %p978 = pneg %p250
        $region158: #{tpu_custom_call.1} parent=111 // pred_check_branch
          %980 = sbr.rel (%p978) target = $region160
        $region159: #{tpu_custom_call.1} parent=111 // pred_region
          %981 = dma.done [#allocation5], 32
        $region160: #{tpu_custom_call.1} parent=111 // pred_fallthru
          _
        // Predicated region
        $region161: #{tpu_custom_call.1} parent=111 // pred_check
          %p982 = pneg %p276
        $region162: #{tpu_custom_call.1} parent=111 // pred_check_branch
          %984 = sbr.rel (%p982) target = $region164
        $region163: #{tpu_custom_call.1} parent=111 // pred_region
          %985 = dma.done [#allocation14], 32
        $region164: #{tpu_custom_call.1} parent=111 // pred_fallthru
          _
        // Predicated region
        $region165: #{tpu_custom_call.1} parent=111 // pred_check
          %p986 = pneg %p302
        $region166: #{tpu_custom_call.1} parent=111 // pred_check_branch
          %988 = sbr.rel (%p986) target = $region168
        $region167: #{tpu_custom_call.1} parent=111 // pred_region
          %989 = dma.done [#allocation14], 32
        $region168: #{tpu_custom_call.1} parent=111 // pred_fallthru
          _
        // Predicated region
        $region169: #{tpu_custom_call.1} parent=111 // pred_check
          %p990 = pneg %p328
        $region170: #{tpu_custom_call.1} parent=111 // pred_check_branch
          %992 = sbr.rel (%p990) target = $region172
        $region171: #{tpu_custom_call.1} parent=111 // pred_region
          %993 = dma.done [#allocation6], 16
        $region172: #{tpu_custom_call.1} parent=111 // pred_fallthru
          _
        %994 = sfence
      $region112: #{tpu_custom_call.1} parent=5 // pred_fallthru
        _
      %p995 = scmp.le.s32.totalorder 2, %s23
      // Predicated region
      $region173: #{tpu_custom_call.1} parent=5 // pred_check
        %p996 = pneg %p995
      $region174: #{tpu_custom_call.1} parent=5 // pred_check_branch
        %998 = sbr.rel (%p996) target = $region176
      $region175: #{tpu_custom_call.1} parent=5 // pred_region
        %s999 = ssub.s32 %s23, 2
      $region176: #{tpu_custom_call.1} parent=5 // pred_fallthru
        _
    $region6: #{tpu_custom_call.1} parent=1 // loop_footer
      %s27 = sadd.s32 1, %s23
    $region7: #{tpu_custom_call.1} parent=1 // loop_footer_branch
      %22 = sbr.rel target = $region3
    $region8: #{tpu_custom_call.1} parent=1 // loop_exit
      _
    %1000 = vsyncpa [#allocation4], 1
    %s1001 = scalar_lea.sflag [#allocation4], 1
    %1002 = vsyncpa %s1001, 1
    %1003 = vsyncpa [#allocation8], 1
    %1004 = vsyncpa [#allocation5], 1
    %s1005 = scalar_lea.sflag [#allocation5], 1
    %1006 = vsyncpa %s1005, 1
    %1007 = vsyncpa [#allocation14], 1
    %1008 = vsyncpa [#allocation6], 1
    %s1009 = scalar_lea.sflag [#allocation6], 1
    %1010 = vsyncpa %s1009, 1

</llo_original>
